<compile_context>
chip_gen: v7x
topology: tpu7x:2x2x1
jax: 0.10.0
libtpu: 0.0.40
codegen_flags: <defaults>
</compile_context>

<pallas_src>
import math
import numpy as np
import jax
import jax.numpy as jnp
from jax import lax
from jax.experimental import pallas as pl
from jax.experimental.pallas import tpu as pltpu

N_QUBITS = 3
Q_DEPTH = 2
MAX_LAYERS = 15
DIM = 2 ** N_QUBITS          # 8 amplitudes (all real for this circuit)
IN_FEATURES = 512


# ----------------------------------------------------------------------------
# Kernel
# ----------------------------------------------------------------------------
def quantumnet_kernel(x_ref, wpre_ref, bpre_ref, u_ref, wf_ref, bpost_ref,
                      out_ref):
    # pre_net, computed directly in transposed (lane-dense) layout via an
    # NT matmul:  pre[r, b] = sum_f wpre[r, f] * x[b, f]   (rows 3..7 are pad)
    pre = lax.dot_general(
        wpre_ref[...], x_ref[...],
        dimension_numbers=(((1,), (1,)), ((), ())),
        preferred_element_type=jnp.float32)                    # (8, TILE_B)
    pre = pre + bpre_ref[...]

    # q_in = tanh(pre) * pi/2, RY half-angle h = q_in/2.  After the Hadamard
    # layer each wire is (|0>+|1>)/sqrt2, so after RY(q_in):
    #   amp(|0>) = (cos h - sin h)/sqrt2 = cos(h + pi/4)
    #   amp(|1>) = (cos h + sin h)/sqrt2 = sin(h + pi/4)
    t = jnp.tanh(pre) * (math.pi / 4.0) + (math.pi / 4.0)      # (8, TILE_B)
    cs = jnp.cos(t)
    sn = jnp.sin(t)

    # product state: amp[idx] = a0[b0]*a1[b1]*a2[b2], idx = 4*b0 + 2*b1 + b2
    # (wire 0 = MSB, PennyLane default.qubit convention)
    idx = lax.broadcasted_iota(jnp.int32, (DIM, 1), 0)
    b0 = ((idx >> 2) & 1).astype(jnp.float32)                  # (8, 1)
    b1 = ((idx >> 1) & 1).astype(jnp.float32)
    b2 = (idx & 1).astype(jnp.float32)
    a0 = cs[0:1, :] + b0 * (sn[0:1, :] - cs[0:1, :])           # (8, TILE_B)
    a1 = cs[1:2, :] + b1 * (sn[1:2, :] - cs[1:2, :])
    a2 = cs[2:3, :] + b2 * (sn[2:3, :] - cs[2:3, :])
    state = a0 * (a1 * a2)                                     # (8, TILE_B)

    # batch-independent circuit (CNOT ladders + trainable RY layers), folded
    # offline into a single 8x8 matrix U (column convention).
    amp = jnp.dot(u_ref[...], state, preferred_element_type=jnp.float32)
    probs = amp * amp

    # PauliZ readout + post_net folded into W_fused (n_out, 8); lane-dense store
    out_ref[...] = (jnp.dot(wf_ref[...], probs,
                            preferred_element_type=jnp.float32)
                    + bpost_ref[...])


# ----------------------------------------------------------------------------
# Offline (wrapper-side, still differentiable JAX) folding of the fixed gates
# ----------------------------------------------------------------------------
def _cnot_mat(ctrl, tgt):
    cm = 1 << (N_QUBITS - 1 - ctrl)
    tm = 1 << (N_QUBITS - 1 - tgt)
    p = np.zeros((DIM, DIM), np.float32)
    for i in range(DIM):
        j = i ^ tm if (i & cm) else i
        p[j, i] = 1.0                                          # column convention
    return p


def _zmat():
    z = np.zeros((DIM, N_QUBITS), np.float32)
    for w in range(N_QUBITS):
        for i in range(DIM):
            z[i, w] = 1.0 if ((i >> (N_QUBITS - 1 - w)) & 1) == 0 else -1.0
    return z


def _fold_fixed_circuit(q_params, w_post):
    """U = RY(qw[2]) @ PENT @ RY(qw[1]) @ PENT  and  W_fused = w_post @ Z^T."""
    qw = q_params.reshape(MAX_LAYERS, N_QUBITS)

    def ry_layer_mat(thetas):
        c = jnp.cos(thetas / 2.0)
        s = jnp.sin(thetas / 2.0)
        mats = [jnp.stack([jnp.stack([c[w], -s[w]]),
                           jnp.stack([s[w], c[w]])]) for w in range(N_QUBITS)]
        m = mats[0]
        for w in range(1, N_QUBITS):
            m = jnp.kron(m, mats[w])
        return m                                               # (8, 8)

    pent = jnp.asarray(_cnot_mat(1, 2) @ _cnot_mat(0, 1))      # CNOT(0,1) then CNOT(1,2)
    u = jnp.eye(DIM, dtype=jnp.float32)
    for k in range(Q_DEPTH):
        u = ry_layer_mat(qw[k + 1]) @ (pent @ u)
    wf = w_post.astype(jnp.float32) @ jnp.asarray(_zmat()).T   # (n_out, 8)
    return u.astype(jnp.float32), wf.astype(jnp.float32)


# ----------------------------------------------------------------------------
# Wrapper
# ----------------------------------------------------------------------------
def _round_up(n, m):
    return (n + m - 1) // m * m


def quantumnet_forward(x, params, *, tile_b=1024):
    """x: (B, 512); returns (B, n_output) float32."""
    B = x.shape[0]
    n_out = params["w_post"].shape[0]

    u, wf = _fold_fixed_circuit(params["q_params"], params["w_post"])

    # pre_net weights padded to 8 rows (MXU/sublane friendly), streamed as bf16
    wpre = jnp.zeros((DIM, IN_FEATURES), jnp.float32)
    wpre = wpre.at[:N_QUBITS].set(params["w_pre"].astype(jnp.float32))
    wpre = wpre.astype(jnp.bfloat16)                           # (8, 512)
    bpre = jnp.zeros((DIM, 1), jnp.float32)
    bpre = bpre.at[:N_QUBITS, 0].set(params["b_pre"].astype(jnp.float32))
    bpost = params["b_post"].astype(jnp.float32).reshape(n_out, 1)

    # bf16 activation stream (for peak perf the caller should provide bf16 x)
    x_bf = x.astype(jnp.bfloat16)

    tile_b = min(tile_b, _round_up(B, 8))
    b_pad = _round_up(B, tile_b)
    if b_pad != B:
        x_bf = jnp.pad(x_bf, ((0, b_pad - B), (0, 0)))
    nb = b_pad // tile_b

    out_t = pl.pallas_call(
        quantumnet_kernel,
        out_shape=jax.ShapeDtypeStruct((n_out, b_pad), jnp.float32),
        grid=(nb,),
        in_specs=[
            pl.BlockSpec((tile_b, IN_FEATURES), lambda i: (i, 0)),   # x tile
            pl.BlockSpec((DIM, IN_FEATURES), lambda i: (0, 0)),      # w_pre (bf16)
            pl.BlockSpec((DIM, 1), lambda i: (0, 0)),                # b_pre
            pl.BlockSpec((DIM, DIM), lambda i: (0, 0)),              # U
            pl.BlockSpec((n_out, DIM), lambda i: (0, 0)),            # W_fused
            pl.BlockSpec((n_out, 1), lambda i: (0, 0)),              # b_post
        ],
        out_specs=pl.BlockSpec((n_out, tile_b), lambda i: (0, i)),
        compiler_params=pltpu.CompilerParams(
            dimension_semantics=("parallel",)),
    )(x_bf, wpre, bpre, u, wf, bpost)

    return out_t[:, :B].T                                      # (B, n_out)


# ----------------------------------------------------------------------------
# Pure-JAX reference (independent tensor-factorized simulator)
# ----------------------------------------------------------------------------
def reference_forward(x, params):
    pre = x @ params["w_pre"].T + params["b_pre"]
    q_in = jnp.tanh(pre) * (math.pi / 2.0)                     # (B, 3)
    B = x.shape[0]
    state = jnp.full((B, 2, 2, 2), 1.0 / math.sqrt(8.0), dtype=jnp.float32)

    def ry_mats(theta):                                        # (B,) -> (B,2,2)
        c = jnp.cos(theta / 2.0)
        s = jnp.sin(theta / 2.0)
        return jnp.stack([jnp.stack([c, -s], -1), jnp.stack([s, c], -1)], -2)

    eins = ['bno,bojk->bnjk', 'bno,bjok->bjnk', 'bno,bjko->bjkn']

    def ry_layer(state, thetas):                               # thetas (B, 3)
        for w in range(N_QUBITS):
            state = jnp.einsum(eins[w], ry_mats(thetas[:, w]), state)
        return state

    def cnot01(s):
        return jnp.concatenate([s[:, :1], s[:, 1:, ::-1, :]], axis=1)

    def cnot12(s):
        return jnp.concatenate([s[:, :, :1, :], s[:, :, 1:, ::-1]], axis=2)

    state = ry_layer(state, q_in)
    qw = params["q_params"].reshape(MAX_LAYERS, N_QUBITS)
    for k in range(Q_DEPTH):
        state = cnot12(cnot01(state))
        state = ry_layer(state, jnp.broadcast_to(qw[k + 1], (B, N_QUBITS)))

    probs = state ** 2
    z0 = probs[:, 0].sum((1, 2)) - probs[:, 1].sum((1, 2))
    z1 = probs[:, :, 0].sum((1, 2)) - probs[:, :, 1].sum((1, 2))
    z2 = probs[:, :, :, 0].sum((1, 2)) - probs[:, :, :, 1].sum((1, 2))
    z = jnp.stack([z0, z1, z2], axis=-1)
    return z @ params["w_post"].T + params["b_post"]


if __name__ == "__main__":
    key = jax.random.PRNGKey(0)
    B, n_output = 8, 4
    k1, k2, k3, k4, k5, k6 = jax.random.split(key, 6)
    bound_pre = 1.0 / math.sqrt(IN_FEATURES)
    bound_post = 1.0 / math.sqrt(N_QUBITS)
    params = dict(
        w_pre=jax.random.uniform(k1, (N_QUBITS, IN_FEATURES), jnp.float32,
                                 -bound_pre, bound_pre),
        b_pre=jax.random.uniform(k2, (N_QUBITS,), jnp.float32,
                                 -bound_pre, bound_pre),
        q_params=(0.01 * jax.random.normal(k3, (MAX_LAYERS * N_QUBITS,),
                                           jnp.float32)),
        w_post=jax.random.uniform(k4, (n_output, N_QUBITS), jnp.float32,
                                  -bound_post, bound_post),
        b_post=jax.random.uniform(k5, (n_output,), jnp.float32,
                                  -bound_post, bound_post),
    )
    x = jax.random.normal(k6, (B, IN_FEATURES), jnp.float32)

    out = jax.block_until_ready(quantumnet_forward(x, params))

    # reference evaluated at the same bf16-rounded pre_net inputs
    ref_params = dict(params)
    ref_params["w_pre"] = params["w_pre"].astype(jnp.bfloat16).astype(jnp.float32)
    x_ref = x.astype(jnp.bfloat16).astype(jnp.float32)
    ref = jax.block_until_ready(reference_forward(x_ref, ref_params))

    assert out.shape == (B, n_output)
    assert np.allclose(np.asarray(out), np.asarray(ref), rtol=2e-2, atol=2e-2)
    print("KERNEL_OK")
</pallas_src>

<mosaic_0001>
module attributes {stable_mosaic.version = 11 : i64} {
  func.func @quantumnet_kernel(%arg0: i32, %arg1: memref<8x512xbf16, #tpu.memory_space<vmem>>, %arg2: memref<8x512xbf16, #tpu.memory_space<vmem>>, %arg3: memref<8x1xf32, #tpu.memory_space<vmem>>, %arg4: memref<8x8xf32, #tpu.memory_space<vmem>>, %arg5: memref<4x8xf32, #tpu.memory_space<vmem>>, %arg6: memref<4x1xf32, #tpu.memory_space<vmem>>, %arg7: memref<4x8xf32, #tpu.memory_space<vmem>>) attributes {dimension_semantics = [#tpu.dimension_semantics<parallel>], iteration_bounds = array<i64: 1>, scalar_prefetch = 0 : i64, scratch_operands = 0 : i64, tpu.core_type = #tpu.core_type<tc>, window_params = [{transform_indices = @transform_0, window_bounds = array<i64: 8, 512>}, {pipeline_mode = #tpu.pipeline_mode<synchronous>, transform_indices = @transform_1, window_bounds = array<i64: 8, 512>}, {pipeline_mode = #tpu.pipeline_mode<synchronous>, transform_indices = @transform_2, window_bounds = array<i64: 8, 1>}, {pipeline_mode = #tpu.pipeline_mode<synchronous>, transform_indices = @transform_3, window_bounds = array<i64: 8, 8>}, {pipeline_mode = #tpu.pipeline_mode<synchronous>, transform_indices = @transform_4, window_bounds = array<i64: 4, 8>}, {pipeline_mode = #tpu.pipeline_mode<synchronous>, transform_indices = @transform_5, window_bounds = array<i64: 4, 1>}, {transform_indices = @transform_6, window_bounds = array<i64: 4, 8>}]} {
    %c0 = arith.constant 0 : index
    %c0_0 = arith.constant 0 : index
    %0 = vector.load %arg2[%c0, %c0_0] : memref<8x512xbf16, #tpu.memory_space<vmem>>, vector<8x512xbf16>
    %c0_1 = arith.constant 0 : index
    %c0_2 = arith.constant 0 : index
    %1 = vector.load %arg1[%c0_1, %c0_2] : memref<8x512xbf16, #tpu.memory_space<vmem>>, vector<8x512xbf16>
    %cst = arith.constant dense<0.000000e+00> : vector<8x8xf32>
    %2 = tpu.matmul %0, %1, %cst {dimension_numbers = #tpu.dot_dimension_numbers<[1], [1], [0], [0], [0, 0, 1, 0], [], []>} : vector<8x512xbf16>, vector<8x512xbf16>, vector<8x8xf32> -> vector<8x8xf32>
    %c0_3 = arith.constant 0 : index
    %c0_4 = arith.constant 0 : index
    %3 = vector.load %arg3[%c0_3, %c0_4] : memref<8x1xf32, #tpu.memory_space<vmem>>, vector<8x1xf32>
    %4 = vector.broadcast %3 : vector<8x1xf32> to vector<8x8xf32>
    %5 = arith.addf %2, %4 : vector<8x8xf32>
    %6 = math.tanh %5 : vector<8x8xf32>
    %cst_5 = arith.constant 0.785398185 : f32
    %7 = vector.broadcast %cst_5 : f32 to vector<8x8xf32>
    %8 = arith.mulf %6, %7 : vector<8x8xf32>
    %cst_6 = arith.constant 0.785398185 : f32
    %9 = vector.broadcast %cst_6 : f32 to vector<8x8xf32>
    %10 = arith.addf %8, %9 : vector<8x8xf32>
    %11 = math.cos %10 : vector<8x8xf32>
    %12 = math.sin %10 : vector<8x8xf32>
    %13 = tpu.iota {dimensions = array<i32: 0>} : vector<8x1xi32>
    %c2_i32 = arith.constant 2 : i32
    %14 = vector.broadcast %c2_i32 : i32 to vector<8x1xi32>
    %15 = arith.shrsi %13, %14 : vector<8x1xi32>
    %c1_i32 = arith.constant 1 : i32
    %16 = vector.broadcast %c1_i32 : i32 to vector<8x1xi32>
    %17 = arith.andi %15, %16 : vector<8x1xi32>
    %18 = arith.sitofp %17 : vector<8x1xi32> to vector<8x1xf32>
    %c1_i32_7 = arith.constant 1 : i32
    %19 = vector.broadcast %c1_i32_7 : i32 to vector<8x1xi32>
    %20 = arith.shrsi %13, %19 : vector<8x1xi32>
    %c1_i32_8 = arith.constant 1 : i32
    %21 = vector.broadcast %c1_i32_8 : i32 to vector<8x1xi32>
    %22 = arith.andi %20, %21 : vector<8x1xi32>
    %23 = arith.sitofp %22 : vector<8x1xi32> to vector<8x1xf32>
    %c1_i32_9 = arith.constant 1 : i32
    %24 = vector.broadcast %c1_i32_9 : i32 to vector<8x1xi32>
    %25 = arith.andi %13, %24 : vector<8x1xi32>
    %26 = arith.sitofp %25 : vector<8x1xi32> to vector<8x1xf32>
    %27 = vector.extract_strided_slice %11 {offsets = [0, 0], sizes = [1, 8], strides = [1, 1]} : vector<8x8xf32> to vector<1x8xf32>
    %28 = vector.extract_strided_slice %12 {offsets = [0, 0], sizes = [1, 8], strides = [1, 1]} : vector<8x8xf32> to vector<1x8xf32>
    %29 = vector.extract_strided_slice %11 {offsets = [0, 0], sizes = [1, 8], strides = [1, 1]} : vector<8x8xf32> to vector<1x8xf32>
    %30 = arith.subf %28, %29 : vector<1x8xf32>
    %31 = vector.broadcast %18 : vector<8x1xf32> to vector<8x8xf32>
    %32 = vector.broadcast %30 : vector<1x8xf32> to vector<8x8xf32>
    %33 = arith.mulf %31, %32 : vector<8x8xf32>
    %34 = vector.broadcast %27 : vector<1x8xf32> to vector<8x8xf32>
    %35 = arith.addf %34, %33 : vector<8x8xf32>
    %36 = vector.extract_strided_slice %11 {offsets = [1, 0], sizes = [1, 8], strides = [1, 1]} : vector<8x8xf32> to vector<1x8xf32>
    %37 = vector.extract_strided_slice %12 {offsets = [1, 0], sizes = [1, 8], strides = [1, 1]} : vector<8x8xf32> to vector<1x8xf32>
    %38 = vector.extract_strided_slice %11 {offsets = [1, 0], sizes = [1, 8], strides = [1, 1]} : vector<8x8xf32> to vector<1x8xf32>
    %39 = arith.subf %37, %38 : vector<1x8xf32>
    %40 = vector.broadcast %23 : vector<8x1xf32> to vector<8x8xf32>
    %41 = vector.broadcast %39 : vector<1x8xf32> to vector<8x8xf32>
    %42 = arith.mulf %40, %41 : vector<8x8xf32>
    %43 = vector.broadcast %36 : vector<1x8xf32> to vector<8x8xf32>
    %44 = arith.addf %43, %42 : vector<8x8xf32>
    %45 = vector.extract_strided_slice %11 {offsets = [2, 0], sizes = [1, 8], strides = [1, 1]} : vector<8x8xf32> to vector<1x8xf32>
    %46 = vector.extract_strided_slice %12 {offsets = [2, 0], sizes = [1, 8], strides = [1, 1]} : vector<8x8xf32> to vector<1x8xf32>
    %47 = vector.extract_strided_slice %11 {offsets = [2, 0], sizes = [1, 8], strides = [1, 1]} : vector<8x8xf32> to vector<1x8xf32>
    %48 = arith.subf %46, %47 : vector<1x8xf32>
    %49 = vector.broadcast %26 : vector<8x1xf32> to vector<8x8xf32>
    %50 = vector.broadcast %48 : vector<1x8xf32> to vector<8x8xf32>
    %51 = arith.mulf %49, %50 : vector<8x8xf32>
    %52 = vector.broadcast %45 : vector<1x8xf32> to vector<8x8xf32>
    %53 = arith.addf %52, %51 : vector<8x8xf32>
    %54 = arith.mulf %44, %53 : vector<8x8xf32>
    %55 = arith.mulf %35, %54 : vector<8x8xf32>
    %c0_10 = arith.constant 0 : index
    %c0_11 = arith.constant 0 : index
    %56 = vector.load %arg4[%c0_10, %c0_11] : memref<8x8xf32, #tpu.memory_space<vmem>>, vector<8x8xf32>
    %cst_12 = arith.constant dense<0.000000e+00> : vector<8x8xf32>
    %57 = tpu.matmul %56, %55, %cst_12 {dimension_numbers = #tpu.dot_dimension_numbers<[1], [0], [0], [1], [0, 0, 1, 1], [], []>} : vector<8x8xf32>, vector<8x8xf32>, vector<8x8xf32> -> vector<8x8xf32>
    %58 = arith.mulf %57, %57 : vector<8x8xf32>
    %c0_13 = arith.constant 0 : index
    %c0_14 = arith.constant 0 : index
    %59 = vector.load %arg5[%c0_13, %c0_14] : memref<4x8xf32, #tpu.memory_space<vmem>>, vector<4x8xf32>
    %cst_15 = arith.constant dense<0.000000e+00> : vector<4x8xf32>
    %60 = tpu.matmul %59, %58, %cst_15 {dimension_numbers = #tpu.dot_dimension_numbers<[1], [0], [0], [1], [0, 0, 1, 1], [], []>} : vector<4x8xf32>, vector<8x8xf32>, vector<4x8xf32> -> vector<4x8xf32>
    %c0_16 = arith.constant 0 : index
    %c0_17 = arith.constant 0 : index
    %61 = vector.load %arg6[%c0_16, %c0_17] : memref<4x1xf32, #tpu.memory_space<vmem>>, vector<4x1xf32>
    %62 = vector.broadcast %61 : vector<4x1xf32> to vector<4x8xf32>
    %63 = arith.addf %60, %62 : vector<4x8xf32>
    %c0_18 = arith.constant 0 : index
    %c0_19 = arith.constant 0 : index
    %64 = vector.load %arg7[%c0_18, %c0_19] : memref<4x8xf32, #tpu.memory_space<vmem>>, vector<4x8xf32>
    tpu.vector_store %arg7[%c0_18, %c0_19], %63 {strides = array<i32>} : memref<4x8xf32, #tpu.memory_space<vmem>>, vector<4x8xf32>,
    return
  }
  func.func @transform_0(%arg0: i32) -> (i32, i32) {
    %c0_i32 = arith.constant 0 : i32
    %c0_i32_0 = arith.constant 0 : i32
    return %arg0, %c0_i32 : i32, i32
  }
  func.func @transform_1(%arg0: i32) -> (i32, i32) {
    %c0_i32 = arith.constant 0 : i32
    %c0_i32_0 = arith.constant 0 : i32
    %c0_i32_1 = arith.constant 0 : i32
    return %c0_i32, %c0_i32_0 : i32, i32
  }
  func.func @transform_2(%arg0: i32) -> (i32, i32) {
    %c0_i32 = arith.constant 0 : i32
    %c0_i32_0 = arith.constant 0 : i32
    %c0_i32_1 = arith.constant 0 : i32
    return %c0_i32, %c0_i32_0 : i32, i32
  }
  func.func @transform_3(%arg0: i32) -> (i32, i32) {
    %c0_i32 = arith.constant 0 : i32
    %c0_i32_0 = arith.constant 0 : i32
    %c0_i32_1 = arith.constant 0 : i32
    return %c0_i32, %c0_i32_0 : i32, i32
  }
  func.func @transform_4(%arg0: i32) -> (i32, i32) {
    %c0_i32 = arith.constant 0 : i32
    %c0_i32_0 = arith.constant 0 : i32
    %c0_i32_1 = arith.constant 0 : i32
    return %c0_i32, %c0_i32_0 : i32, i32
  }
  func.func @transform_5(%arg0: i32) -> (i32, i32) {
    %c0_i32 = arith.constant 0 : i32
    %c0_i32_0 = arith.constant 0 : i32
    %c0_i32_1 = arith.constant 0 : i32
    return %c0_i32, %c0_i32_0 : i32, i32
  }
  func.func @transform_6(%arg0: i32) -> (i32, i32) {
    %c0_i32 = arith.constant 0 : i32
    %c0_i32_0 = arith.constant 0 : i32
    return %c0_i32, %arg0 : i32, i32
  }
}

</mosaic_0001>

<llo_original>
// kernel: tpu_custom_call.1
$region0: #{tpu_custom_call.1}
  #allocation0 [shape = 'u32[]', space=smem, size = 0x4, offset = 0x4, fixed_abs, tag = 'smem constant byte address 0x4 - core index']
  #allocation1 [shape = 'u32[144,128]{1,0:T(1,128)}', space=vmem, size = 0x12000, scoped, tag = 'internal scratch']
  %s0 = inlined_call_operand.hbm [shape: bf16[8,512], index: 0, kind: input, shape index: {}]
  %s1 = inlined_call_operand.vmem [shape: bf16[8,512], index: 1, kind: input, shape index: {}]
  %s2 = inlined_call_operand.vmem [shape: f32[8,1], index: 2, kind: input, shape index: {}]
  %s3 = inlined_call_operand.vmem [shape: f32[8,8], index: 3, kind: input, shape index: {}]
  %s4 = inlined_call_operand.vmem [shape: f32[4,8], index: 4, kind: input, shape index: {}]
  %s5 = inlined_call_operand.vmem [shape: f32[4,1], index: 5, kind: input, shape index: {}]
  %s6 = inlined_call_operand.hbm [shape: f32[4,8], index: 6, kind: output, shape index: {}]
  %s7 = sld [smem:[#allocation0]]
  $region38: #{tpu_custom_call.1} parent=0
    _
  %s9 = ssub.s32 1, %s7
  %s10 = scalar_select 0, %s9, %s7
  $region1: #{tpu_custom_call.1} parent=0
    #allocation2 [shape = 'u8[8192]{0}', space=vmem, size = 0x2000, scoped, tag = 'input window, operand 0, single buffered']
    #allocation3 [shape = 's32[1]{0}', space=sflag, size = 0x4, scoped, tag = 'scoped memory for tpu_custom_call.1']
    #allocation4 [shape = 's32[1]{0}', space=sflag, size = 0x4, scoped, tag = 'scoped memory for tpu_custom_call.1']
    #allocation5 [shape = 'u8[2048]{0}', space=vmem, size = 0x800, scoped, tag = 'output window, operand 0, single buffered']
    %11 = vsyncpa [#allocation3], 0
    %12 = vsyncpa [#allocation4], 0
    // Predicated region
    $region2: #{tpu_custom_call.1} parent=1 // pred_check
      _
    $region3: #{tpu_custom_call.1} parent=1 // pred_check_branch
      %14 = sbr.rel (0) target = $region5
    $region4: #{tpu_custom_call.1} parent=1 // pred_region
      %s16 = ssub.s32 256, 256
      %17 = vsyncadd [#allocation3], %s16
      %s19 = sshll.u32 [#allocation2], 4
      %s20 = int_to_ptr.vmem [resolvable:$true] %s19
      %22 = dma.hbm_to_vmem [thread:$0]  %s0, 256, %s20, [#allocation3]
    $region5: #{tpu_custom_call.1} parent=1 // pred_fallthru
      _
    // Predicated region
    $region6: #{tpu_custom_call.1} parent=1 // pred_check
      _
    $region7: #{tpu_custom_call.1} parent=1 // pred_check_branch
      %24 = sbr.rel (0) target = $region9
    $region8: #{tpu_custom_call.1} parent=1 // pred_region
      _
    $region9: #{tpu_custom_call.1} parent=1 // pred_fallthru
      _
    // Predicated region
    $region10: #{tpu_custom_call.1} parent=1 // pred_check
      _
    $region11: #{tpu_custom_call.1} parent=1 // pred_check_branch
      %26 = sbr.rel (0) target = $region13
    $region12: #{tpu_custom_call.1} parent=1 // pred_region
      _
    $region13: #{tpu_custom_call.1} parent=1 // pred_fallthru
      _
    // Predicated region
    $region14: #{tpu_custom_call.1} parent=1 // pred_check
      _
    $region15: #{tpu_custom_call.1} parent=1 // pred_check_branch
      %28 = sbr.rel (0) target = $region17
    $region16: #{tpu_custom_call.1} parent=1 // pred_region
      _
    $region17: #{tpu_custom_call.1} parent=1 // pred_fallthru
      _
    // Predicated region
    $region18: #{tpu_custom_call.1} parent=1 // pred_check
      _
    $region19: #{tpu_custom_call.1} parent=1 // pred_check_branch
      %30 = sbr.rel (0) target = $region21
    $region20: #{tpu_custom_call.1} parent=1 // pred_region
      _
    $region21: #{tpu_custom_call.1} parent=1 // pred_fallthru
      _
    // Predicated region
    $region22: #{tpu_custom_call.1} parent=1 // pred_check
      _
    $region23: #{tpu_custom_call.1} parent=1 // pred_check_branch
      %32 = sbr.rel (0) target = $region25
    $region24: #{tpu_custom_call.1} parent=1 // pred_region
      _
    $region25: #{tpu_custom_call.1} parent=1 // pred_fallthru
      _
    // Predicated region
    $region26: #{tpu_custom_call.1} parent=1 // pred_check
      _
    $region27: #{tpu_custom_call.1} parent=1 // pred_check_branch
      %34 = sbr.rel (0) target = $region29
    $region28: #{tpu_custom_call.1} parent=1 // pred_region
      %35 = dma.done [#allocation3], 256
    $region29: #{tpu_custom_call.1} parent=1 // pred_fallthru
      _
    %v37 = vld [vmem:[%s1] sm:$0xff]
    %v38 = vld [vmem:[%s1 + $0x8] sm:$0xff]
    %v39 = vld [vmem:[#allocation2] sm:$0xff]
    %v40 = vld [vmem:[#allocation2 + $0x8] sm:$0xff]
    %v41 = vld [vmem:[%s2] sm:$0xff]
    %43 = vset.pattern.permute.xlu0 0
    %44 = vperm.xlu0 %43, %v41
    %v45 = vpop.permute.xlu0 %44
    %v49 = vunpack.c.l.b16 %v37
    %v50 = vunpack.c.h.b16 %v37
    %v51 = vunpack.c.l.b16 %v38
    %v52 = vunpack.c.h.b16 %v38
    %v53 = vpack.c.b16 %v49, %v49
    %v54 = vpack.c.b16 %v50, %v50
    %v55 = vpack.c.b16 %v51, %v51
    %v56 = vpack.c.b16 %v52, %v52
    %v63 = vunpack.c.l.b16 %v39
    %v64 = vunpack.c.h.b16 %v39
    %v65 = vunpack.c.l.b16 %v40
    %v66 = vunpack.c.h.b16 %v40
    %v67 = vpack.c.b16 %v63, %v63
    %v68 = vpack.c.b16 %v64, %v64
    %v69 = vpack.c.b16 %v65, %v65
    %v70 = vpack.c.b16 %v66, %v66
    %75 = vmatprep.subr.bf16.mxu0 %v68
    %76 = vmatpush1.bf16.xpose.msra.mxu0 %v67
    %77 = vmatprep.subr.bf16.mxu0 0
    %78 = vmatpush1.bf16.xpose.msra.mxu0 0
    %79 = vmatprep.subr.bf16.mxu0 0
    %80 = vmatpush1.bf16.xpose.msra.mxu0 0
    %81 = vmatprep.subr.bf16.mxu0 0
    %82 = vmatpush1.bf16.xpose.msra.mxu0 0
    %83 = vmatprep.subr.bf16.mxu0 0
    %84 = vmatpush1.bf16.xpose.msra.mxu0 0
    %85 = vmatprep.subr.bf16.mxu0 0
    %86 = vmatpush1.bf16.xpose.msra.mxu0 0
    %87 = vmatprep.subr.bf16.mxu0 0
    %88 = vmatpush1.bf16.xpose.msra.mxu0 0
    %89 = vmatprep.subr.bf16.mxu0 0
    %90 = vmatpush1.bf16.xpose.msra.mxu0 0
    %91 = vmatprep.subr.bf16.mxu0 0
    %92 = vmatpush1.bf16.xpose.msra.mxu0 0
    %93 = vmatprep.subr.bf16.mxu0 0
    %94 = vmatpush1.bf16.xpose.msra.mxu0 0
    %95 = vmatprep.subr.bf16.mxu0 0
    %96 = vmatpush1.bf16.xpose.msra.mxu0 0
    %97 = vmatprep.subr.bf16.mxu0 0
    %98 = vmatpush1.bf16.xpose.msra.mxu0 0
    %99 = vmatprep.subr.bf16.mxu0 0
    %100 = vmatpush1.bf16.xpose.msra.mxu0 0
    %101 = vmatprep.subr.bf16.mxu0 0
    %102 = vmatpush1.bf16.xpose.msra.mxu0 0
    %103 = vmatprep.subr.bf16.mxu0 0
    %104 = vmatpush1.bf16.xpose.msra.mxu0 0
    %105 = vmatprep.subr.bf16.mxu0 0
    %106 = vmatpush1.bf16.xpose.msra.mxu0 0
    %107 = vmatprep.mubr.bf16.mxu0 %v54
    %108 = vmatmul.mubr.bf16.gmra.mrb[0].mxu0 %v53
    %v109 = vpop.f32.mrb[0].mxu0
    %v110 = vadd.f32 %v45, %v109
    %v111 = vpop.f32.mrb[0].mxu0
    %v112 = vpop.f32.mrb[0].mxu0
    %v113 = vpop.f32.mrb[0].mxu0
    %114 = vdwg.mxu0
    %115 = vmatprep.subr.bf16.mxu0 %v70
    %116 = vmatpush1.bf16.xpose.msra.mxu0 %v69
    %117 = vmatprep.subr.bf16.mxu0 0
    %118 = vmatpush1.bf16.xpose.msra.mxu0 0
    %119 = vmatprep.subr.bf16.mxu0 0
    %120 = vmatpush1.bf16.xpose.msra.mxu0 0
    %121 = vmatprep.subr.bf16.mxu0 0
    %122 = vmatpush1.bf16.xpose.msra.mxu0 0
    %123 = vmatprep.subr.bf16.mxu0 0
    %124 = vmatpush1.bf16.xpose.msra.mxu0 0
    %125 = vmatprep.subr.bf16.mxu0 0
    %126 = vmatpush1.bf16.xpose.msra.mxu0 0
    %127 = vmatprep.subr.bf16.mxu0 0
    %128 = vmatpush1.bf16.xpose.msra.mxu0 0
    %129 = vmatprep.subr.bf16.mxu0 0
    %130 = vmatpush1.bf16.xpose.msra.mxu0 0
    %131 = vmatprep.subr.bf16.mxu0 0
    %132 = vmatpush1.bf16.xpose.msra.mxu0 0
    %133 = vmatprep.subr.bf16.mxu0 0
    %134 = vmatpush1.bf16.xpose.msra.mxu0 0
    %135 = vmatprep.subr.bf16.mxu0 0
    %136 = vmatpush1.bf16.xpose.msra.mxu0 0
    %137 = vmatprep.subr.bf16.mxu0 0
    %138 = vmatpush1.bf16.xpose.msra.mxu0 0
    %139 = vmatprep.subr.bf16.mxu0 0
    %140 = vmatpush1.bf16.xpose.msra.mxu0 0
    %141 = vmatprep.subr.bf16.mxu0 0
    %142 = vmatpush1.bf16.xpose.msra.mxu0 0
    %143 = vmatprep.subr.bf16.mxu0 0
    %144 = vmatpush1.bf16.xpose.msra.mxu0 0
    %145 = vmatprep.subr.bf16.mxu0 0
    %146 = vmatpush1.bf16.xpose.msra.mxu0 0
    %147 = vmatprep.mubr.bf16.mxu0 %v56
    %148 = vmatmul.mubr.bf16.gmra.mrb[0].mxu0 %v55
    %v149 = vpop.f32.mrb[0].mxu0
    %v150 = vadd.f32 %v110, %v149
    %v151 = vpop.f32.mrb[0].mxu0
    %v152 = vpop.f32.mrb[0].mxu0
    %v153 = vpop.f32.mrb[0].mxu0
    %154 = vdwg.mxu0
    %v155 = vtanh.pop %v150
    %v156 = vmul.f32 %v155, 0.7853982
    %v157 = vadd.f32 %v156, 0.7853982
    %v158 = vand.u32 2147483647, %v157
    %vm159 = vcmp.le.f32.partialorder %v158, 0.7853982
    %vm160 = vcmp.lt.s32.totalorder %v157, 0
    %v161 = vand.u32 %v157, 2139095040
    %v162 = vshrl.u32 %v161, 23
    %v163 = vsub.s32 %v162, 127
    %v164 = vand.u32 2147483647, %v157
    %v165 = vand.u32 %v164, 8388607
    %v166 = vor.u32 %v165, 8388608
    %v167 = vsub.s32 0, %v166
    %v168 = vadd.s32 %v163, 1
    %vm169 = vcmp.gt.s32.totalorder %v168, 0
    %v170 = vsel %vm169, %v168, 0
    %v171 = vshrl.u32 %v170, 5
    %v172 = vand.u32 %v170, 31
    %v173 = vsub.s32 32, %v172
    %v174 = vshrl.u32 683565275, %v173
    %v175 = vshll.u32 683565275, %v172
    %v176 = vshrl.u32 2475754826, %v173
    %v177 = vor.u32 %v175, %v176
    %v178 = vshll.u32 2475754826, %v172
    %v179 = vshrl.u32 2131351028, %v173
    %v180 = vor.u32 %v178, %v179
    %v181 = vshll.u32 2131351028, %v172
    %v182 = vshrl.u32 2102212464, %v173
    %v183 = vor.u32 %v181, %v182
    %v184 = vshll.u32 2102212464, %v172
    %v185 = vshrl.u32 920167782, %v173
    %v186 = vor.u32 %v184, %v185
    %v187 = vshll.u32 920167782, %v172
    %v188 = vshrl.u32 1326507024, %v173
    %v189 = vor.u32 %v187, %v188
    %vm190 = vcmp.lt.s32.totalorder %v171, 1
    %vm191 = vcmp.lt.s32.totalorder %v171, 2
    %vm192 = vcmp.lt.s32.totalorder %v171, 3
    %vm193 = vcmp.lt.s32.totalorder %v171, 4
    %v194 = vsel %vm190, %v174, %v177
    %v195 = vsel %vm193, %v183, 2102212464
    %v196 = vsel %vm192, %v180, %v195
    %v197 = vsel %vm191, %v194, %v196
    %v198 = vsel %vm190, %v177, %v180
    %v199 = vsel %vm193, %v186, 920167782
    %v200 = vsel %vm192, %v183, %v199
    %v201 = vsel %vm191, %v198, %v200
    %v202 = vsel %vm190, %v180, %v183
    %v203 = vsel %vm193, %v189, 1326507024
    %v204 = vsel %vm192, %v186, %v203
    %v205 = vsel %vm191, %v202, %v204
    %v206 = vshll.u32 %v166, 8
    %v207 = vmul.u32.u64.compose %v206, %v205
    %v208 = vextract.low.u32 %v207
    %v209 = vextract.high.u32 %v207
    %v210 = vmul.u32.u64.compose %v206, %v201
    %v211 = vextract.low.u32 %v210
    %v212 = vextract.high.u32 %v210
    %v213 = vmul.u32 %v206, %v197
    %v214 = vadd.s32 %v209, %v211
    %vm215 = vc.u32 %v209, %v211
    %v216 = vadd.s32 %v212, 1
    %v217 = vsel %vm215, %v216, %v212
    %v218 = vadd.s32 %v213, %v217
    %v219 = vadd.s32 %v218, 536870912
    %v220 = vshrl.u32 %v219, 30
    %v221 = vshll.u32 %v220, 30
    %v222 = vsub.s32 %v218, %v221
    %vm223 = vcmp.lt.s32.totalorder %v222, 0
    %v224 = vsub.s32 0, %v222
    %v225 = vsel %vm223, %v224, %v222
    %v226 = vclz %v225
    %v227 = vsub.s32 %v226, 2
    %vm228 = vcmp.gt.s32.totalorder 0, %v227
    %v229 = vsel %vm228, 0, %v227
    %v230 = vsub.s32 32, %v229
    %v231 = vshll.u32 %v222, %v229
    %v232 = vshrl.u32 %v214, %v230
    %v233 = vor.u32 %v231, %v232
    %v234 = vsub.s32 4294967266, %v229
    %v235 = vadd.s32 %v234, 127
    %v236 = vshll.u32 %v235, 23
    %v237 = vor.u32 4788187, %v236
    %v238 = vand.u32 2147483647, %v237
    %v240 = vcvt.s32.f32 %v233
    %v241 = vmul.f32 %v240, %v238
    %v242 = vxor.u32 %v241, 2147483648
    %v243 = vsel %vm160, %v242, %v241
    %v244 = vsub.s32 4, %v220
    %v245 = vsel %vm160, %v244, %v220
    %v246 = vsel %vm159, %v157, %v243
    %v247 = vsel %vm159, 0, %v245
    %v248 = vcosq.f32.pop %v246
    %v249 = vsinq.f32.pop %v246
    %vm250 = vweird.f32 %v157
    %v251 = vand.u32 %v247, 3
    %vm252 = vcmp.lt.s32.totalorder %v251, 2
    %vm253 = vcmp.eq.s32.totalorder %v251, 0
    %v254 = vxor.u32 %v249, 2147483648
    %v255 = vsel %vm253, %v248, %v254
    %vm256 = vcmp.eq.s32.totalorder %v251, 2
    %v257 = vxor.u32 %v248, 2147483648
    %v258 = vsel %vm256, %v257, %v249
    %v259 = vsel %vm252, %v255, %v258
    %v260 = vsel %vm250, nan, %v259
    %v261 = vand.u32 2147483647, %v157
    %vm262 = vcmp.le.f32.partialorder %v261, 0.7853982
    %vm263 = vcmp.lt.s32.totalorder %v157, 0
    %v264 = vand.u32 %v157, 2139095040
    %v265 = vshrl.u32 %v264, 23
    %v266 = vsub.s32 %v265, 127
    %v267 = vand.u32 2147483647, %v157
    %v268 = vand.u32 %v267, 8388607
    %v269 = vor.u32 %v268, 8388608
    %v270 = vsub.s32 0, %v269
    %v271 = vadd.s32 %v266, 1
    %vm272 = vcmp.gt.s32.totalorder %v271, 0
    %v273 = vsel %vm272, %v271, 0
    %v274 = vshrl.u32 %v273, 5
    %v275 = vand.u32 %v273, 31
    %v276 = vsub.s32 32, %v275
    %v277 = vshrl.u32 683565275, %v276
    %v278 = vshll.u32 683565275, %v275
    %v279 = vshrl.u32 2475754826, %v276
    %v280 = vor.u32 %v278, %v279
    %v281 = vshll.u32 2475754826, %v275
    %v282 = vshrl.u32 2131351028, %v276
    %v283 = vor.u32 %v281, %v282
    %v284 = vshll.u32 2131351028, %v275
    %v285 = vshrl.u32 2102212464, %v276
    %v286 = vor.u32 %v284, %v285
    %v287 = vshll.u32 2102212464, %v275
    %v288 = vshrl.u32 920167782, %v276
    %v289 = vor.u32 %v287, %v288
    %v290 = vshll.u32 920167782, %v275
    %v291 = vshrl.u32 1326507024, %v276
    %v292 = vor.u32 %v290, %v291
    %vm293 = vcmp.lt.s32.totalorder %v274, 1
    %vm294 = vcmp.lt.s32.totalorder %v274, 2
    %vm295 = vcmp.lt.s32.totalorder %v274, 3
    %vm296 = vcmp.lt.s32.totalorder %v274, 4
    %v297 = vsel %vm293, %v277, %v280
    %v298 = vsel %vm296, %v286, 2102212464
    %v299 = vsel %vm295, %v283, %v298
    %v300 = vsel %vm294, %v297, %v299
    %v301 = vsel %vm293, %v280, %v283
    %v302 = vsel %vm296, %v289, 920167782
    %v303 = vsel %vm295, %v286, %v302
    %v304 = vsel %vm294, %v301, %v303
    %v305 = vsel %vm293, %v283, %v286
    %v306 = vsel %vm296, %v292, 1326507024
    %v307 = vsel %vm295, %v289, %v306
    %v308 = vsel %vm294, %v305, %v307
    %v309 = vshll.u32 %v269, 8
    %v310 = vmul.u32.u64.compose %v309, %v308
    %v311 = vextract.low.u32 %v310
    %v312 = vextract.high.u32 %v310
    %v313 = vmul.u32.u64.compose %v309, %v304
    %v314 = vextract.low.u32 %v313
    %v315 = vextract.high.u32 %v313
    %v316 = vmul.u32 %v309, %v300
    %v317 = vadd.s32 %v312, %v314
    %vm318 = vc.u32 %v312, %v314
    %v319 = vadd.s32 %v315, 1
    %v320 = vsel %vm318, %v319, %v315
    %v321 = vadd.s32 %v316, %v320
    %v322 = vadd.s32 %v321, 536870912
    %v323 = vshrl.u32 %v322, 30
    %v324 = vshll.u32 %v323, 30
    %v325 = vsub.s32 %v321, %v324
    %vm326 = vcmp.lt.s32.totalorder %v325, 0
    %v327 = vsub.s32 0, %v325
    %v328 = vsel %vm326, %v327, %v325
    %v329 = vclz %v328
    %v330 = vsub.s32 %v329, 2
    %vm331 = vcmp.gt.s32.totalorder 0, %v330
    %v332 = vsel %vm331, 0, %v330
    %v333 = vsub.s32 32, %v332
    %v334 = vshll.u32 %v325, %v332
    %v335 = vshrl.u32 %v317, %v333
    %v336 = vor.u32 %v334, %v335
    %v337 = vsub.s32 4294967266, %v332
    %v338 = vadd.s32 %v337, 127
    %v339 = vshll.u32 %v338, 23
    %v340 = vor.u32 4788187, %v339
    %v341 = vand.u32 2147483647, %v340
    %v343 = vcvt.s32.f32 %v336
    %v344 = vmul.f32 %v343, %v341
    %v345 = vxor.u32 %v344, 2147483648
    %v346 = vsel %vm263, %v345, %v344
    %v347 = vsub.s32 4, %v323
    %v348 = vsel %vm263, %v347, %v323
    %v349 = vsel %vm262, %v157, %v346
    %v350 = vsel %vm262, 0, %v348
    %v351 = vcosq.f32.pop %v349
    %v352 = vsinq.f32.pop %v349
    %vm353 = vweird.f32 %v157
    %v354 = vadd.s32 %v350, 3
    %v355 = vand.u32 %v354, 3
    %vm356 = vcmp.lt.s32.totalorder %v355, 2
    %vm357 = vcmp.eq.s32.totalorder %v355, 0
    %v358 = vxor.u32 %v352, 2147483648
    %v359 = vsel %vm357, %v351, %v358
    %vm360 = vcmp.eq.s32.totalorder %v355, 2
    %v361 = vxor.u32 %v351, 2147483648
    %v362 = vsel %vm360, %v361, %v352
    %v363 = vsel %vm356, %v359, %v362
    %v364 = vsel %vm353, nan, %v363
    %v365 = vlaneseq
    %v366 = vshrl.u32 %v365, 7
    %v367 = vshra.s32 %v366, 2
    %v368 = vand.u32 %v367, 1
    %v369 = vcvt.s32.f32 %v368
    %v370 = vshra.s32 %v366, 1
    %v371 = vand.u32 %v370, 1
    %v372 = vcvt.s32.f32 %v371
    %v373 = vand.u32 %v366, 1
    %v374 = vcvt.s32.f32 %v373
    %v375 = vsub.f32 %v364, %v260
    %v376 = vlaneseq
    %v377 = vshrl.u32 %v376, 7
    %v378 = vsub.s32 0, %v377
    %v379 = vrot.slane %v375, %v378
    %v380 = vmul.f32 %v369, %v379
    %v381 = vlaneseq
    %v382 = vshrl.u32 %v381, 7
    %v383 = vsub.s32 0, %v382
    %v384 = vrot.slane %v260, %v383
    %v385 = vadd.f32 %v384, %v380
    %v386 = vlaneseq
    %v387 = vshrl.u32 %v386, 7
    %v388 = vsub.s32 1, %v387
    %v389 = vrot.slane %v375, %v388
    %v390 = vmul.f32 %v372, %v389
    %v391 = vlaneseq
    %v392 = vshrl.u32 %v391, 7
    %v393 = vsub.s32 1, %v392
    %v394 = vrot.slane %v260, %v393
    %v395 = vadd.f32 %v394, %v390
    %v396 = vlaneseq
    %v397 = vshrl.u32 %v396, 7
    %v398 = vsub.s32 2, %v397
    %v399 = vrot.slane %v375, %v398
    %v400 = vmul.f32 %v374, %v399
    %v401 = vlaneseq
    %v402 = vshrl.u32 %v401, 7
    %v403 = vsub.s32 2, %v402
    %v404 = vrot.slane %v260, %v403
    %v405 = vadd.f32 %v404, %v400
    %v406 = vmul.f32 %v395, %v405
    %v407 = vmul.f32 %v385, %v406
    %v408 = vld [vmem:[%s3] sm:$0xff]
    %vm409 = vcmask 64512
    %v411 = vsel %vm409, %v408, 0
    %413 = vmatprep.subr.mxu0 0.0
    %414 = vmatpush1.msra.mxu0 %v407
    %415 = vmatprep.subr.mxu0 0.0
    %416 = vmatpush1.msra.mxu0 0.0
    %417 = vmatprep.subr.mxu0 0.0
    %418 = vmatpush1.msra.mxu0 0.0
    %419 = vmatprep.subr.mxu0 0.0
    %420 = vmatpush1.msra.mxu0 0.0
    %421 = vmatprep.subr.mxu0 0.0
    %422 = vmatpush1.msra.mxu0 0.0
    %423 = vmatprep.subr.mxu0 0.0
    %424 = vmatpush1.msra.mxu0 0.0
    %425 = vmatprep.subr.mxu0 0.0
    %426 = vmatpush1.msra.mxu0 0.0
    %427 = vmatprep.subr.mxu0 0.0
    %428 = vmatpush1.msra.mxu0 0.0
    %429 = vmatprep.subr.mxu0 0.0
    %430 = vmatpush1.msra.mxu0 0.0
    %431 = vmatprep.subr.mxu0 0.0
    %432 = vmatpush1.msra.mxu0 0.0
    %433 = vmatprep.subr.mxu0 0.0
    %434 = vmatpush1.msra.mxu0 0.0
    %435 = vmatprep.subr.mxu0 0.0
    %436 = vmatpush1.msra.mxu0 0.0
    %437 = vmatprep.subr.mxu0 0.0
    %438 = vmatpush1.msra.mxu0 0.0
    %439 = vmatprep.subr.mxu0 0.0
    %440 = vmatpush1.msra.mxu0 0.0
    %441 = vmatprep.subr.mxu0 0.0
    %442 = vmatpush1.msra.mxu0 0.0
    %443 = vmatprep.subr.mxu0 0.0
    %444 = vmatpush1.msra.mxu0 0.0
    %445 = vmatprep.subr.mxu0 0.0
    %446 = vmatpush1.msra.mxu0 0.0
    %447 = vmatprep.subr.mxu0 0.0
    %448 = vmatpush1.msra.mxu0 0.0
    %449 = vmatprep.subr.mxu0 0.0
    %450 = vmatpush1.msra.mxu0 0.0
    %451 = vmatprep.subr.mxu0 0.0
    %452 = vmatpush1.msra.mxu0 0.0
    %453 = vmatprep.subr.mxu0 0.0
    %454 = vmatpush1.msra.mxu0 0.0
    %455 = vmatprep.subr.mxu0 0.0
    %456 = vmatpush1.msra.mxu0 0.0
    %457 = vmatprep.subr.mxu0 0.0
    %458 = vmatpush1.msra.mxu0 0.0
    %459 = vmatprep.subr.mxu0 0.0
    %460 = vmatpush1.msra.mxu0 0.0
    %461 = vmatprep.subr.mxu0 0.0
    %462 = vmatpush1.msra.mxu0 0.0
    %463 = vmatprep.subr.mxu0 0.0
    %464 = vmatpush1.msra.mxu0 0.0
    %465 = vmatprep.subr.mxu0 0.0
    %466 = vmatpush1.msra.mxu0 0.0
    %467 = vmatprep.subr.mxu0 0.0
    %468 = vmatpush1.msra.mxu0 0.0
    %469 = vmatprep.subr.mxu0 0.0
    %470 = vmatpush1.msra.mxu0 0.0
    %471 = vmatprep.subr.mxu0 0.0
    %472 = vmatpush1.msra.mxu0 0.0
    %473 = vmatprep.subr.mxu0 0.0
    %474 = vmatpush1.msra.mxu0 0.0
    %475 = vmatprep.subr.mxu0 0.0
    %476 = vmatpush1.msra.mxu0 0.0
    %477 = vmatprep.mubr.f32.mxu0 0.0
    %478 = vmatmul.mubr.f32.gmra.mrb[0].mxu0 %v411
    %v479 = vpop.f32.mrb[0].mxu0
    %v480 = vadd.f32 0.0, %v479
    %v481 = vpop.f32.mrb[0].mxu0
    %482 = vdwg.mxu0
    %v483 = vmul.f32 %v480, %v480
    %v484 = vld [vmem:[%s4] sm:$0xf]
    %v485 = vld [vmem:[%s5] sm:$0xf]
    %487 = vset.pattern.permute.xlu0 0
    %488 = vperm.xlu0 %487, %v485
    %v489 = vpop.permute.xlu0 %488
    %v492 = vsel %vm409, %v484, 0
    %494 = vmatprep.subr.mxu0 0.0
    %495 = vmatpush1.msra.mxu0 %v483
    %496 = vmatprep.subr.mxu0 0.0
    %497 = vmatpush1.msra.mxu0 0.0
    %498 = vmatprep.subr.mxu0 0.0
    %499 = vmatpush1.msra.mxu0 0.0
    %500 = vmatprep.subr.mxu0 0.0
    %501 = vmatpush1.msra.mxu0 0.0
    %502 = vmatprep.subr.mxu0 0.0
    %503 = vmatpush1.msra.mxu0 0.0
    %504 = vmatprep.subr.mxu0 0.0
    %505 = vmatpush1.msra.mxu0 0.0
    %506 = vmatprep.subr.mxu0 0.0
    %507 = vmatpush1.msra.mxu0 0.0
    %508 = vmatprep.subr.mxu0 0.0
    %509 = vmatpush1.msra.mxu0 0.0
    %510 = vmatprep.subr.mxu0 0.0
    %511 = vmatpush1.msra.mxu0 0.0
    %512 = vmatprep.subr.mxu0 0.0
    %513 = vmatpush1.msra.mxu0 0.0
    %514 = vmatprep.subr.mxu0 0.0
    %515 = vmatpush1.msra.mxu0 0.0
    %516 = vmatprep.subr.mxu0 0.0
    %517 = vmatpush1.msra.mxu0 0.0
    %518 = vmatprep.subr.mxu0 0.0
    %519 = vmatpush1.msra.mxu0 0.0
    %520 = vmatprep.subr.mxu0 0.0
    %521 = vmatpush1.msra.mxu0 0.0
    %522 = vmatprep.subr.mxu0 0.0
    %523 = vmatpush1.msra.mxu0 0.0
    %524 = vmatprep.subr.mxu0 0.0
    %525 = vmatpush1.msra.mxu0 0.0
    %526 = vmatprep.subr.mxu0 0.0
    %527 = vmatpush1.msra.mxu0 0.0
    %528 = vmatprep.subr.mxu0 0.0
    %529 = vmatpush1.msra.mxu0 0.0
    %530 = vmatprep.subr.mxu0 0.0
    %531 = vmatpush1.msra.mxu0 0.0
    %532 = vmatprep.subr.mxu0 0.0
    %533 = vmatpush1.msra.mxu0 0.0
    %534 = vmatprep.subr.mxu0 0.0
    %535 = vmatpush1.msra.mxu0 0.0
    %536 = vmatprep.subr.mxu0 0.0
    %537 = vmatpush1.msra.mxu0 0.0
    %538 = vmatprep.subr.mxu0 0.0
    %539 = vmatpush1.msra.mxu0 0.0
    %540 = vmatprep.subr.mxu0 0.0
    %541 = vmatpush1.msra.mxu0 0.0
    %542 = vmatprep.subr.mxu0 0.0
    %543 = vmatpush1.msra.mxu0 0.0
    %544 = vmatprep.subr.mxu0 0.0
    %545 = vmatpush1.msra.mxu0 0.0
    %546 = vmatprep.subr.mxu0 0.0
    %547 = vmatpush1.msra.mxu0 0.0
    %548 = vmatprep.subr.mxu0 0.0
    %549 = vmatpush1.msra.mxu0 0.0
    %550 = vmatprep.subr.mxu0 0.0
    %551 = vmatpush1.msra.mxu0 0.0
    %552 = vmatprep.subr.mxu0 0.0
    %553 = vmatpush1.msra.mxu0 0.0
    %554 = vmatprep.subr.mxu0 0.0
    %555 = vmatpush1.msra.mxu0 0.0
    %556 = vmatprep.subr.mxu0 0.0
    %557 = vmatpush1.msra.mxu0 0.0
    %558 = vmatprep.mubr.f32.mxu0 0.0
    %559 = vmatmul.mubr.f32.gmra.mrb[0].mxu0 %v492
    %v560 = vpop.f32.mrb[0].mxu0
    %v561 = vadd.f32 %v489, %v560
    %v562 = vpop.f32.mrb[0].mxu0
    %563 = vdwg.mxu0
    %vm564 = vcmask 60416
    %565 = vst.msk [vmem:[#allocation5] sm:$0xf] %vm564, %v561
    // Predicated region
    $region30: #{tpu_custom_call.1} parent=1 // pred_check
      _
    $region31: #{tpu_custom_call.1} parent=1 // pred_check_branch
      %567 = sbr.rel (0) target = $region33
    $region32: #{tpu_custom_call.1} parent=1 // pred_region
      %s569 = ssub.s32 64, 64
      %570 = vsyncadd [#allocation4], %s569
      %s572 = sshll.u32 [#allocation5], 4
      %s573 = int_to_ptr.vmem [resolvable:$true] %s572
      %575 = dma.vmem_to_hbm [thread:$0]  %s573, 64, %s6, [#allocation4]
    $region33: #{tpu_custom_call.1} parent=1 // pred_fallthru
      _
    // Predicated region
    $region34: #{tpu_custom_call.1} parent=1 // pred_check
      _
    $region35: #{tpu_custom_call.1} parent=1 // pred_check_branch
      %577 = sbr.rel (0) target = $region37
    $region36: #{tpu_custom_call.1} parent=1 // pred_region
      %578 = dma.done [#allocation4], 64
    $region37: #{tpu_custom_call.1} parent=1 // pred_fallthru
      _
    %579 = vsyncpa [#allocation3], 1
    %580 = vsyncpa [#allocation4], 1

</llo_original>
